<compile_context>
chip_gen: v7x
topology: tpu7x:2x2x1
jax: 0.10.0
libtpu: 0.0.40
codegen_flags: <defaults>
</compile_context>

<pallas_src>
import functools

import jax
import jax.numpy as jnp
from jax.experimental import pallas as pl
from jax.experimental.pallas import tpu as pltpu


def _round_up(x, m):
    return ((x + m - 1) // m) * m


def _bf16_transcendentals_supported():
    """bf16 VPU/EUP path exists on v6e/v7x; keep f32 elsewhere (v5e etc.)."""
    try:
        kind = jax.devices()[0].device_kind.lower()
    except Exception:
        return False
    return ("v6" in kind) or ("v7" in kind)


def net_kernel(x_ref, w1_ref, b1_ref, w2_ref, b2_ref, out_ref, *, q, bf16_act):
    # x: (TM, d); w1: (d, 2q) bf16; b1: (1, 2q) f32; w2: (2q, q) bf16; b2: (1, q)
    x = x_ref[...]
    if x.dtype != jnp.bfloat16:
        x = x.astype(jnp.bfloat16)
    w1 = w1_ref[...]  # already bf16 (cast once in wrapper)
    w2 = w2_ref[...]

    # hidden1 pre-activation: MXU matmul, f32 accumulate, f32 bias add.
    a1 = jnp.dot(x, w1, preferred_element_type=jnp.float32) + b1_ref[...]

    if bf16_act:
        # Packed bf16 transcendentals (v6e/v7x EUP) -- halves EUP pushes on
        # heavily lane-padded 32/16-wide activations.
        h1 = jnp.tanh(a1.astype(jnp.bfloat16))                       # (TM, 2q) bf16
        a2 = jnp.dot(h1, w2, preferred_element_type=jnp.float32) + b2_ref[...]
        h2_n = jnp.tanh(a2.astype(jnp.bfloat16))                     # (TM, q) bf16
        m = jnp.max(h2_n, axis=-1, keepdims=True)
        e = jnp.exp(h2_n - m).astype(jnp.float32)                    # exp on bf16
        h2 = h2_n.astype(jnp.float32)
    else:
        # f32 transcendentals (v5e has no bf16 EUP path).
        h1 = jnp.tanh(a1)                                            # (TM, 2q) f32
        a2 = (jnp.dot(h1.astype(jnp.bfloat16), w2,
                      preferred_element_type=jnp.float32) + b2_ref[...])
        h2 = jnp.tanh(a2)                                            # (TM, q) f32
        m = jnp.max(h2, axis=-1, keepdims=True)
        e = jnp.exp(h2 - m)

    denom = jnp.sum(e, axis=-1, keepdims=True)
    soft = e * pl.reciprocal(denom, approx=True)                     # EUP vrcp

    # One full-width unmasked block store: [:, :q] = softmax, [:, q:] = h2.
    out_ref[...] = jnp.concatenate([soft, h2], axis=-1).astype(out_ref.dtype)


def net_forward(x, w1, b1, w2, b2, *, block_rows=4096, bf16_act=None):
    """x: (B, d); w1: (d, 2q); b1: (1, 2q); w2: (2q, q); b2: (1, q).

    Returns (softmax(h2), h2), both (B, q) f32.
    """
    B, d = x.shape
    q2 = w1.shape[1]
    q = w2.shape[1]

    if bf16_act is None:
        bf16_act = _bf16_transcendentals_supported()

    # Weights/bias are tiny and VMEM-resident across the whole grid: cast the
    # weights to bf16 once here instead of re-casting every grid step.
    w1 = w1.astype(jnp.bfloat16)
    w2 = w2.astype(jnp.bfloat16)
    b1 = b1.astype(jnp.float32)
    b2 = b2.astype(jnp.float32)

    # Batch tile: large (amortize ~0.35us/step overhead) but
    #  * capped at block_rows=4096 so double-buffered (128-lane-padded) x/out
    #    blocks (~4*tm*512 B) stay under v5e's 16 MiB scoped-VMEM default;
    #  * clamped to ceil(B/2) rounded to 8 so there are >=2 grid steps and the
    #    "parallel" axis can shard across both TensorCores on v7x.
    if B <= 8:
        tm = B                      # block == full batch dim (valid tiling)
    else:
        tm = min(block_rows, _round_up(pl.cdiv(B, 2), 8))
    grid = (pl.cdiv(B, tm),)

    resident = lambda shape: pl.BlockSpec(shape, lambda i: (0, 0))

    kernel = functools.partial(net_kernel, q=q, bf16_act=bf16_act)

    packed = pl.pallas_call(
        kernel,
        out_shape=jax.ShapeDtypeStruct((B, 2 * q), jnp.float32),
        grid=grid,
        in_specs=[
            pl.BlockSpec((tm, d), lambda i: (i, 0)),   # x: streamed over batch
            resident((d, q2)),                         # w1: VMEM-resident
            resident((1, q2)),                         # b1
            resident((q2, q)),                         # w2
            resident((1, q)),                          # b2
        ],
        out_specs=pl.BlockSpec((tm, 2 * q), lambda i: (i, 0)),
        compiler_params=pltpu.CompilerParams(
            dimension_semantics=("parallel",),
        ),
    )(x, w1, b1, w2, b2)

    soft = packed[:, :q]
    h2 = packed[:, q:]
    return soft, h2


def init_params(key, d, q):
    """Deterministic init matching nn.Linear shapes (stored transposed)."""
    k1, k2, k3, k4 = jax.random.split(key, 4)
    lim1 = 1.0 / jnp.sqrt(d)
    lim2 = 1.0 / jnp.sqrt(2 * q)
    w1 = jax.random.uniform(k1, (d, 2 * q), jnp.float32, -lim1, lim1)
    b1 = jax.random.uniform(k2, (1, 2 * q), jnp.float32, -lim1, lim1)
    w2 = jax.random.uniform(k3, (2 * q, q), jnp.float32, -lim2, lim2)
    b2 = jax.random.uniform(k4, (1, q), jnp.float32, -lim2, lim2)
    return w1, b1, w2, b2


if __name__ == "__main__":
    # Shapes consistent with the module: Linear(d, 2q) / Linear(2q, q), d=50.
    # Small batch; the tile clamp yields tm=32 -> grid=(2,), so pipelining and
    # the 2-TensorCore split path are exercised even at this size.
    B, d, q = 64, 50, 16

    key = jax.random.PRNGKey(0)
    kx, kp = jax.random.split(key)
    x = jax.random.normal(kx, (B, d), jnp.float32)
    w1, b1, w2, b2 = init_params(kp, d, q)

    fwd = jax.jit(net_forward)
    soft, h2 = fwd(x, w1, b1, w2, b2)
    jax.block_until_ready((soft, h2))

    # Sanity check against plain-JAX f32 reference. Tolerance covers bf16 MXU
    # operands, bf16 transcendentals (v6e/v7x path) and approx reciprocal —
    # all deliberate perf choices; use f32/approx=False paths for 1e-5 parity.
    h1_ref = jnp.tanh(x @ w1 + b1)
    h2_ref = jnp.tanh(h1_ref @ w2 + b2)
    soft_ref = jax.nn.softmax(h2_ref, axis=-1)
    assert soft.shape == (B, q) and h2.shape == (B, q)
    assert jnp.allclose(h2, h2_ref, atol=5e-2), float(jnp.abs(h2 - h2_ref).max())
    assert jnp.allclose(soft, soft_ref, atol=5e-2), float(jnp.abs(soft - soft_ref).max())

    print("KERNEL_OK")
</pallas_src>

<mosaic_0001>
module attributes {stable_mosaic.version = 11 : i64} {
  func.func @net_kernel(%arg0: i32, %arg1: memref<32x50xf32, #tpu.memory_space<vmem>>, %arg2: memref<50x32xbf16, #tpu.memory_space<vmem>>, %arg3: memref<1x32xf32, #tpu.memory_space<vmem>>, %arg4: memref<32x16xbf16, #tpu.memory_space<vmem>>, %arg5: memref<1x16xf32, #tpu.memory_space<vmem>>, %arg6: memref<32x32xf32, #tpu.memory_space<vmem>>) attributes {dimension_semantics = [#tpu.dimension_semantics<parallel>], iteration_bounds = array<i64: 2>, scalar_prefetch = 0 : i64, scratch_operands = 0 : i64, tpu.core_type = #tpu.core_type<tc>, window_params = [{transform_indices = @transform_0, window_bounds = array<i64: 32, 50>}, {pipeline_mode = #tpu.pipeline_mode<synchronous>, transform_indices = @transform_1, window_bounds = array<i64: 50, 32>}, {pipeline_mode = #tpu.pipeline_mode<synchronous>, transform_indices = @transform_2, window_bounds = array<i64: 1, 32>}, {pipeline_mode = #tpu.pipeline_mode<synchronous>, transform_indices = @transform_3, window_bounds = array<i64: 32, 16>}, {pipeline_mode = #tpu.pipeline_mode<synchronous>, transform_indices = @transform_4, window_bounds = array<i64: 1, 16>}, {transform_indices = @transform_5, window_bounds = array<i64: 32, 32>}]} {
    %c0 = arith.constant 0 : index
    %c0_0 = arith.constant 0 : index
    %0 = vector.load %arg1[%c0, %c0_0] : memref<32x50xf32, #tpu.memory_space<vmem>>, vector<32x50xf32>
    %1 = arith.truncf %0 : vector<32x50xf32> to vector<32x50xbf16>
    %c0_1 = arith.constant 0 : index
    %c0_2 = arith.constant 0 : index
    %2 = vector.load %arg2[%c0_1, %c0_2] : memref<50x32xbf16, #tpu.memory_space<vmem>>, vector<50x32xbf16>
    %c0_3 = arith.constant 0 : index
    %c0_4 = arith.constant 0 : index
    %3 = vector.load %arg4[%c0_3, %c0_4] : memref<32x16xbf16, #tpu.memory_space<vmem>>, vector<32x16xbf16>
    %cst = arith.constant dense<0.000000e+00> : vector<32x32xf32>
    %4 = tpu.matmul %1, %2, %cst {dimension_numbers = #tpu.dot_dimension_numbers<[1], [0], [0], [1], [0, 0, 1, 1], [], []>} : vector<32x50xbf16>, vector<50x32xbf16>, vector<32x32xf32> -> vector<32x32xf32>
    %c0_5 = arith.constant 0 : index
    %c0_6 = arith.constant 0 : index
    %5 = vector.load %arg3[%c0_5, %c0_6] : memref<1x32xf32, #tpu.memory_space<vmem>>, vector<1x32xf32>
    %6 = vector.broadcast %5 : vector<1x32xf32> to vector<32x32xf32>
    %7 = arith.addf %4, %6 : vector<32x32xf32>
    %8 = math.tanh %7 : vector<32x32xf32>
    %9 = arith.truncf %8 : vector<32x32xf32> to vector<32x32xbf16>
    %cst_7 = arith.constant dense<0.000000e+00> : vector<32x16xf32>
    %10 = tpu.matmul %9, %3, %cst_7 {dimension_numbers = #tpu.dot_dimension_numbers<[1], [0], [0], [1], [0, 0, 1, 1], [], []>} : vector<32x32xbf16>, vector<32x16xbf16>, vector<32x16xf32> -> vector<32x16xf32>
    %c0_8 = arith.constant 0 : index
    %c0_9 = arith.constant 0 : index
    %11 = vector.load %arg5[%c0_8, %c0_9] : memref<1x16xf32, #tpu.memory_space<vmem>>, vector<1x16xf32>
    %12 = vector.broadcast %11 : vector<1x16xf32> to vector<32x16xf32>
    %13 = arith.addf %10, %12 : vector<32x16xf32>
    %14 = math.tanh %13 : vector<32x16xf32>
    %cst_10 = arith.constant dense<0xFF800000> : vector<32xf32>
    %15 = vector.multi_reduction <maximumf>, %14, %cst_10 [1] : vector<32x16xf32> to vector<32xf32>
    %16 = vector.shape_cast %15 : vector<32xf32> to vector<32x1xf32>
    %17 = vector.broadcast %16 : vector<32x1xf32> to vector<32x16xf32>
    %18 = arith.subf %14, %17 : vector<32x16xf32>
    %19 = math.exp %18 : vector<32x16xf32>
    %cst_11 = arith.constant dense<0.000000e+00> : vector<32xf32>
    %20 = vector.multi_reduction <add>, %19, %cst_11 [1] : vector<32x16xf32> to vector<32xf32>
    %21 = vector.shape_cast %20 : vector<32xf32> to vector<32x1xf32>
    %22 = tpu.reciprocal %21 {approx = true} : vector<32x1xf32> -> vector<32x1xf32>
    %23 = vector.broadcast %22 : vector<32x1xf32> to vector<32x16xf32>
    %24 = arith.mulf %19, %23 : vector<32x16xf32>
    %25 = tpu.concatenate %24, %14 in 1 : vector<32x16xf32>, vector<32x16xf32> -> vector<32x32xf32>
    %c0_12 = arith.constant 0 : index
    %c0_13 = arith.constant 0 : index
    %26 = vector.load %arg6[%c0_12, %c0_13] : memref<32x32xf32, #tpu.memory_space<vmem>>, vector<32x32xf32>
    tpu.vector_store %arg6[%c0_12, %c0_13], %25 {strides = array<i32>} : memref<32x32xf32, #tpu.memory_space<vmem>>, vector<32x32xf32>,
    return
  }
  func.func @transform_0(%arg0: i32) -> (i32, i32) {
    %c0_i32 = arith.constant 0 : i32
    %c0_i32_0 = arith.constant 0 : i32
    return %arg0, %c0_i32 : i32, i32
  }
  func.func @transform_1(%arg0: i32) -> (i32, i32) {
    %c0_i32 = arith.constant 0 : i32
    %c0_i32_0 = arith.constant 0 : i32
    %c0_i32_1 = arith.constant 0 : i32
    return %c0_i32, %c0_i32_0 : i32, i32
  }
  func.func @transform_2(%arg0: i32) -> (i32, i32) {
    %c0_i32 = arith.constant 0 : i32
    %c0_i32_0 = arith.constant 0 : i32
    %c0_i32_1 = arith.constant 0 : i32
    return %c0_i32, %c0_i32_0 : i32, i32
  }
  func.func @transform_3(%arg0: i32) -> (i32, i32) {
    %c0_i32 = arith.constant 0 : i32
    %c0_i32_0 = arith.constant 0 : i32
    %c0_i32_1 = arith.constant 0 : i32
    return %c0_i32, %c0_i32_0 : i32, i32
  }
  func.func @transform_4(%arg0: i32) -> (i32, i32) {
    %c0_i32 = arith.constant 0 : i32
    %c0_i32_0 = arith.constant 0 : i32
    %c0_i32_1 = arith.constant 0 : i32
    return %c0_i32, %c0_i32_0 : i32, i32
  }
  func.func @transform_5(%arg0: i32) -> (i32, i32) {
    %c0_i32 = arith.constant 0 : i32
    %c0_i32_0 = arith.constant 0 : i32
    return %arg0, %c0_i32 : i32, i32
  }
}

</mosaic_0001>

<llo_original>
// kernel: net_forward.1
$region0: #{net_forward.1}
  #allocation0 [shape = 'u32[]', space=smem, size = 0x4, offset = 0x4, fixed_abs, tag = 'smem constant byte address 0x4 - core index']
  #allocation1 [shape = 'u32[144,128]{1,0:T(1,128)}', space=vmem, size = 0x12000, scoped, tag = 'internal scratch']
  %s0 = inlined_call_operand.vmem [shape: f32[64,50], index: 0, kind: input, shape index: {}]
  %s1 = inlined_call_operand.vmem [shape: bf16[50,32], index: 1, kind: input, shape index: {}]
  %s2 = inlined_call_operand.vmem [shape: f32[1,32], index: 2, kind: input, shape index: {}]
  %s3 = inlined_call_operand.vmem [shape: bf16[32,16], index: 3, kind: input, shape index: {}]
  %s4 = inlined_call_operand.vmem [shape: f32[1,16], index: 4, kind: input, shape index: {}]
  %s5 = inlined_call_operand.vmem [shape: f32[64,32], index: 5, kind: output, shape index: {}]
  %s6 = sld [smem:[#allocation0]]
  $region53: #{net_forward.1} parent=0
    _
  %s8 = ssub.s32 1, %s6
  %s9 = scalar_select 0, %s8, %s6
  loop: start=0, step=1, limit=4
  $region2: #{net_forward.1} parent=0 // loop_pre_header
    _
  $region3: #{net_forward.1} parent=0 // loop_header
    %s11 = sphi 0, %s15
    %p12 = scmp.ge.s32.totalorder %s11, 4
    %s21 = sphi 0, %s23
    %s24 = sphi 0, %s21
    %s25 = sphi 0, %s24
    %s41 = sphi 0, %s25
    %s45 = sphi 0, %s45
    %s47 = sphi 0, %s45
    %s48 = sphi 0, %s47
    %s62 = sphi 0, %s48
    %s66 = sphi 0, %s66
    %s68 = sphi 0, %s66
    %s69 = sphi 0, %s68
    %s83 = sphi 0, %s69
    %s87 = sphi 0, %s87
    %s89 = sphi 0, %s87
    %s90 = sphi 0, %s89
    %s104 = sphi 0, %s90
    %s108 = sphi 0, %s108
    %s110 = sphi 0, %s108
    %s111 = sphi 0, %s110
    %s125 = sphi 0, %s111
    %s131 = sphi 0, %s133
    %s134 = sphi 0, %s131
    %s135 = sphi 0, %s134
    %s151 = sphi 0, %s135
  $region4: #{net_forward.1} parent=0 // loop_header_branch
    %14 = sbr.rel (%p12) target = $region8
  $region5: #{net_forward.1} parent=0 // loop_body
    %s16 = ssub.s32 %s11, 1
    %s17 = ssub.s32 %s11, 2
    %s18 = sadd.s32 %s11, 1
    %s19 = ssub.s32 %s11, %s18
    %p20 = scmp.eq.s32.totalorder %s19, 0
    %s22 = sadd.s32 %s21, 1
    %s23 = scalar_select %p20, %s21, %s22
    %p26 = pneg %p20
    %p27 = scmp.eq.s32.totalorder %s11, 1
    %p28 = por %p26, %p27
    %p29 = scmp.ne.s32.totalorder %s21, %s24
    %p30 = scmp.eq.s32.totalorder %s11, 0
    %p31 = por %p29, %p30
    %p32 = scmp.ne.s32.totalorder %s21, %s24
    %p33 = scmp.eq.s32.totalorder %s16, 1
    %p34 = por %p32, %p33
    %p35 = scmp.ne.s32.totalorder %s24, %s25
    %p36 = scmp.eq.s32.totalorder %s16, 0
    %p37 = por %p35, %p36
    %p38 = scmp.ne.s32.totalorder %s24, %s25
    %p39 = scmp.eq.s32.totalorder %s17, 1
    %p40 = por %p38, %p39
    %p42 = scmp.ne.s32.totalorder %s25, %s41
    %p43 = scmp.eq.s32.totalorder %s17, 0
    %p44 = por %p42, %p43
    %s46 = sadd.s32 %s45, 1
    %p49 = scmp.eq.s32.totalorder %s11, 1
    %p50 = scmp.ne.s32.totalorder %s45, %s47
    %p51 = scmp.eq.s32.totalorder %s11, 0
    %p52 = por %p50, %p51
    %p53 = scmp.ne.s32.totalorder %s45, %s47
    %p54 = scmp.eq.s32.totalorder %s16, 1
    %p55 = por %p53, %p54
    %p56 = scmp.ne.s32.totalorder %s47, %s48
    %p57 = scmp.eq.s32.totalorder %s16, 0
    %p58 = por %p56, %p57
    %p59 = scmp.ne.s32.totalorder %s47, %s48
    %p60 = scmp.eq.s32.totalorder %s17, 1
    %p61 = por %p59, %p60
    %p63 = scmp.ne.s32.totalorder %s48, %s62
    %p64 = scmp.eq.s32.totalorder %s17, 0
    %p65 = por %p63, %p64
    %s67 = sadd.s32 %s66, 1
    %p70 = scmp.eq.s32.totalorder %s11, 1
    %p71 = scmp.ne.s32.totalorder %s66, %s68
    %p72 = scmp.eq.s32.totalorder %s11, 0
    %p73 = por %p71, %p72
    %p74 = scmp.ne.s32.totalorder %s66, %s68
    %p75 = scmp.eq.s32.totalorder %s16, 1
    %p76 = por %p74, %p75
    %p77 = scmp.ne.s32.totalorder %s68, %s69
    %p78 = scmp.eq.s32.totalorder %s16, 0
    %p79 = por %p77, %p78
    %p80 = scmp.ne.s32.totalorder %s68, %s69
    %p81 = scmp.eq.s32.totalorder %s17, 1
    %p82 = por %p80, %p81
    %p84 = scmp.ne.s32.totalorder %s69, %s83
    %p85 = scmp.eq.s32.totalorder %s17, 0
    %p86 = por %p84, %p85
    %s88 = sadd.s32 %s87, 1
    %p91 = scmp.eq.s32.totalorder %s11, 1
    %p92 = scmp.ne.s32.totalorder %s87, %s89
    %p93 = scmp.eq.s32.totalorder %s11, 0
    %p94 = por %p92, %p93
    %p95 = scmp.ne.s32.totalorder %s87, %s89
    %p96 = scmp.eq.s32.totalorder %s16, 1
    %p97 = por %p95, %p96
    %p98 = scmp.ne.s32.totalorder %s89, %s90
    %p99 = scmp.eq.s32.totalorder %s16, 0
    %p100 = por %p98, %p99
    %p101 = scmp.ne.s32.totalorder %s89, %s90
    %p102 = scmp.eq.s32.totalorder %s17, 1
    %p103 = por %p101, %p102
    %p105 = scmp.ne.s32.totalorder %s90, %s104
    %p106 = scmp.eq.s32.totalorder %s17, 0
    %p107 = por %p105, %p106
    %s109 = sadd.s32 %s108, 1
    %p112 = scmp.eq.s32.totalorder %s11, 1
    %p113 = scmp.ne.s32.totalorder %s108, %s110
    %p114 = scmp.eq.s32.totalorder %s11, 0
    %p115 = por %p113, %p114
    %p116 = scmp.ne.s32.totalorder %s108, %s110
    %p117 = scmp.eq.s32.totalorder %s16, 1
    %p118 = por %p116, %p117
    %p119 = scmp.ne.s32.totalorder %s110, %s111
    %p120 = scmp.eq.s32.totalorder %s16, 0
    %p121 = por %p119, %p120
    %p122 = scmp.ne.s32.totalorder %s110, %s111
    %p123 = scmp.eq.s32.totalorder %s17, 1
    %p124 = por %p122, %p123
    %p126 = scmp.ne.s32.totalorder %s111, %s125
    %p127 = scmp.eq.s32.totalorder %s17, 0
    %p128 = por %p126, %p127
    %s129 = ssub.s32 %s11, %s18
    %p130 = scmp.eq.s32.totalorder %s129, 0
    %s132 = sadd.s32 %s131, 1
    %s133 = scalar_select %p130, %s131, %s132
    %p136 = pneg %p130
    %p137 = scmp.eq.s32.totalorder %s11, 1
    %p138 = por %p136, %p137
    %p139 = scmp.ne.s32.totalorder %s131, %s134
    %p140 = scmp.eq.s32.totalorder %s11, 0
    %p141 = por %p139, %p140
    %p142 = scmp.ne.s32.totalorder %s131, %s134
    %p143 = scmp.eq.s32.totalorder %s16, 1
    %p144 = por %p142, %p143
    %p145 = scmp.ne.s32.totalorder %s134, %s135
    %p146 = scmp.eq.s32.totalorder %s16, 0
    %p147 = por %p145, %p146
    %p148 = scmp.ne.s32.totalorder %s134, %s135
    %p149 = scmp.eq.s32.totalorder %s17, 1
    %p150 = por %p148, %p149
    %p152 = scmp.ne.s32.totalorder %s135, %s151
    %p153 = scmp.eq.s32.totalorder %s17, 0
    %p154 = por %p152, %p153
    %p155 = scmp.le.s32.totalorder 1, %s11
    %p156 = scmp.lt.s32.totalorder %s11, 3
    %p157 = pnand %p155, %p156
    %p158 = pneg %p157
    // Predicated region
    $region9: #{net_forward.1} parent=5 // pred_check
      _
    $region10: #{net_forward.1} parent=5 // pred_check_branch
      %160 = sbr.rel (%p157) target = $region12
    $region11: #{net_forward.1} parent=5 // pred_region
      %s161 = ssub.s32 %s11, 1
      // Predicated region
      $region13: #{net_forward.1} parent=11 // pred_check
        %p162 = pneg %p58
      $region14: #{net_forward.1} parent=11 // pred_check_branch
        %164 = sbr.rel (%p162) target = $region16
      $region15: #{net_forward.1} parent=11 // pred_region
        _
      $region16: #{net_forward.1} parent=11 // pred_fallthru
        _
      // Predicated region
      $region17: #{net_forward.1} parent=11 // pred_check
        %p165 = pneg %p79
      $region18: #{net_forward.1} parent=11 // pred_check_branch
        %167 = sbr.rel (%p165) target = $region20
      $region19: #{net_forward.1} parent=11 // pred_region
        _
      $region20: #{net_forward.1} parent=11 // pred_fallthru
        _
      // Predicated region
      $region21: #{net_forward.1} parent=11 // pred_check
        %p168 = pneg %p100
      $region22: #{net_forward.1} parent=11 // pred_check_branch
        %170 = sbr.rel (%p168) target = $region24
      $region23: #{net_forward.1} parent=11 // pred_region
        _
      $region24: #{net_forward.1} parent=11 // pred_fallthru
        _
      // Predicated region
      $region25: #{net_forward.1} parent=11 // pred_check
        %p171 = pneg %p121
      $region26: #{net_forward.1} parent=11 // pred_check_branch
        %173 = sbr.rel (%p171) target = $region28
      $region27: #{net_forward.1} parent=11 // pred_region
        _
      $region28: #{net_forward.1} parent=11 // pred_fallthru
        _
    $region12: #{net_forward.1} parent=5 // pred_fallthru
      _
    %p174 = scmp.lt.s32.totalorder %s11, 2
    // Predicated region
    $region29: #{net_forward.1} parent=5 // pred_check
      %p175 = pneg %p174
    $region30: #{net_forward.1} parent=5 // pred_check_branch
      %177 = sbr.rel (%p175) target = $region32
    $region31: #{net_forward.1} parent=5 // pred_region
      // Predicated region
      $region33: #{net_forward.1} parent=31 // pred_check
        %p178 = pneg %p31
      $region34: #{net_forward.1} parent=31 // pred_check_branch
        %180 = sbr.rel (%p178) target = $region36
      $region35: #{net_forward.1} parent=31 // pred_region
        %s181 = smul.u32 4, %s11
        %p182 = scmp.lt.s32.totalorder %s181, 7
        %s183 = scalar_select %p182, %s181, 7
        %s184 = smul.addr %s183, 8
        %s185 = scalar_lea.vmem %s0, %s184
        %s186 = smul.u32 4, %s11
      $region36: #{net_forward.1} parent=31 // pred_fallthru
        _
    $region32: #{net_forward.1} parent=5 // pred_fallthru
      _
    %p187 = scmp.le.s32.totalorder 1, %s11
    %p188 = scmp.lt.s32.totalorder %s11, 3
    %p189 = pnand %p187, %p188
    %p190 = pneg %p189
    // Predicated region
    $region37: #{net_forward.1} parent=5 // pred_check
      _
    $region38: #{net_forward.1} parent=5 // pred_check_branch
      %192 = sbr.rel (%p189) target = $region40
    $region39: #{net_forward.1} parent=5 // pred_region
      %s193 = ssub.s32 %s11, 1
      %s194 = smul.u32 4, %s16
      %p195 = scmp.lt.s32.totalorder %s194, 7
      %s196 = scalar_select %p195, %s194, 7
      %s197 = smul.addr %s196, 8
      %s198 = scalar_lea.vmem %s0, %s197
      %p199 = pneg %p37
      %p200 = pneg %p34
      %p201 = pneg %p58
      %p202 = pneg %p55
      %p203 = pneg %p79
      %p204 = pneg %p76
      %p205 = pneg %p100
      %p206 = pneg %p97
      %p207 = pneg %p121
      %p208 = pneg %p118
      %p209 = pneg %p147
      %p210 = pneg %p144
      %s211 = smul.u32 4, %s16
      %p212 = scmp.lt.s32.totalorder %s211, 7
      %s213 = scalar_select %p212, %s211, 7
      %s214 = smul.addr %s213, 8
      %s215 = scalar_lea.vmem %s5, %s214
      %s216 = smul.u32 4, %s16
      %p217 = scmp.lt.s32.totalorder %s216, 7
      %s218 = scalar_select %p217, %s216, 7
      %s219 = smul.addr %s218, 8
      %s220 = scalar_lea.vmem %s0, %s219
      %s221 = smul.u32 4, %s16
      %s222 = smul.u32 4, %s16
      %p223 = scmp.lt.s32.totalorder %s222, 7
      %s224 = scalar_select %p223, %s222, 7
      %s225 = smul.addr %s224, 8
      %s226 = scalar_lea.vmem %s5, %s225
      %s227 = smul.u32 4, %s16
      %v229 = vld [vmem:[%s220] sm:$0xff]
      %v230 = vld [vmem:[%s220 + $0x8] sm:$0xff]
      %v231 = vld [vmem:[%s220 + $0x10] sm:$0xff]
      %v232 = vld [vmem:[%s220 + $0x18] sm:$0xff]
      %v233 = vpack.c.bf16 %v230, %v229
      %v234 = vpack.c.bf16 %v232, %v231
      %v235 = vld [vmem:[%s1] sm:$0xf]
      %v236 = vld [vmem:[%s1 + $0x4] sm:$0xf]
      %v237 = vld [vmem:[%s1 + $0x8] sm:$0xf]
      %v238 = vld [vmem:[%s1 + $0xc] sm:$0xf]
      %v239 = vld [vmem:[%s1 + $0x10] sm:$0xf]
      %v240 = vld [vmem:[%s1 + $0x14] sm:$0xf]
      %v241 = vld [vmem:[%s1 + $0x18] sm:$0x1]
      %v242 = vld [vmem:[%s3] sm:$0xf]
      %v243 = vld [vmem:[%s3 + $0x4] sm:$0xf]
      %v244 = vld [vmem:[%s3 + $0x8] sm:$0xf]
      %v245 = vld [vmem:[%s3 + $0xc] sm:$0xf]
      %v246 = vld [vmem:[%s2] sm:$0x1]
      %v248 = vlaneseq
      %v249 = vshrl.u32 %v248, 7
      %v250 = vsub.s32 0, %v249
      %v251 = vrot.slane %v246, %v250
      %v260 = vunpack.c.l.b16 %v235
      %v261 = vunpack.c.l.b16 %v236
      %v262 = vunpack.c.l.b16 %v237
      %v263 = vunpack.c.l.b16 %v238
      %v264 = vunpack.c.l.b16 %v239
      %v265 = vunpack.c.l.b16 %v240
      %v266 = vunpack.c.l.b16 %v241
      %v267 = vpack.c.b16 %v261, %v260
      %v268 = vpack.c.b16 %v263, %v262
      %v269 = vpack.c.b16 %v265, %v264
      %v270 = vpack.c.b16 %v266, %v266
      %vm274 = vcmask 408576
      %v276 = vsel %vm274, %v233, 0
      %v279 = vsel %vm274, %v234, 0
      %vm281 = vcmask 1040384
      %v283 = vsel %vm281, %v270, 0
      %285 = vmatprep.subr.bf16.mxu0 0
      %286 = vmatpush1.bf16.msra.mxu0 %v267
      %287 = vmatprep.subr.bf16.mxu0 0
      %288 = vmatpush1.bf16.msra.mxu0 %v268
      %289 = vmatprep.subr.bf16.mxu0 0
      %290 = vmatpush1.bf16.msra.mxu0 %v269
      %291 = vmatprep.subr.bf16.mxu0 0
      %292 = vmatpush1.bf16.msra.mxu0 %v283
      %293 = vmatprep.subr.bf16.mxu0 0
      %294 = vmatpush1.bf16.msra.mxu0 0
      %295 = vmatprep.subr.bf16.mxu0 0
      %296 = vmatpush1.bf16.msra.mxu0 0
      %297 = vmatprep.subr.bf16.mxu0 0
      %298 = vmatpush1.bf16.msra.mxu0 0
      %299 = vmatprep.subr.bf16.mxu0 0
      %300 = vmatpush1.bf16.msra.mxu0 0
      %301 = vmatprep.subr.bf16.mxu0 0
      %302 = vmatpush1.bf16.msra.mxu0 0
      %303 = vmatprep.subr.bf16.mxu0 0
      %304 = vmatpush1.bf16.msra.mxu0 0
      %305 = vmatprep.subr.bf16.mxu0 0
      %306 = vmatpush1.bf16.msra.mxu0 0
      %307 = vmatprep.subr.bf16.mxu0 0
      %308 = vmatpush1.bf16.msra.mxu0 0
      %309 = vmatprep.subr.bf16.mxu0 0
      %310 = vmatpush1.bf16.msra.mxu0 0
      %311 = vmatprep.subr.bf16.mxu0 0
      %312 = vmatpush1.bf16.msra.mxu0 0
      %313 = vmatprep.subr.bf16.mxu0 0
      %314 = vmatpush1.bf16.msra.mxu0 0
      %315 = vmatprep.subr.bf16.mxu0 0
      %316 = vmatpush1.bf16.msra.mxu0 0
      %317 = vmatprep.mubr.bf16.mxu0 0
      %318 = vmatmul.mubr.bf16.gmra.mrb[0].mxu0 %v276
      %v319 = vpop.f32.mrb[0].mxu0
      %v320 = vadd.f32 %v251, %v319
      %v321 = vpop.f32.mrb[0].mxu0
      %v322 = vpop.f32.mrb[0].mxu0
      %v323 = vadd.f32 %v251, %v322
      %v324 = vpop.f32.mrb[0].mxu0
      %325 = vmatprep.mubr.bf16.mxu0 0
      %326 = vmatmul.mubr.bf16.gmra.mrb[0].mxu0 %v279
      %v327 = vpop.f32.mrb[0].mxu0
      %v328 = vadd.f32 %v251, %v327
      %v329 = vpop.f32.mrb[0].mxu0
      %v330 = vpop.f32.mrb[0].mxu0
      %v331 = vadd.f32 %v251, %v330
      %v332 = vpop.f32.mrb[0].mxu0
      %333 = vdwg.mxu0
      %v334 = vtanh.pop %v320
      %v335 = vtanh.pop %v323
      %v336 = vtanh.pop %v328
      %v337 = vtanh.pop %v331
      %v338 = vpack.c.bf16 %v335, %v334
      %v339 = vpack.c.bf16 %v337, %v336
      %v340 = vld [vmem:[%s4] sm:$0x1]
      %v342 = vlaneseq
      %v343 = vshrl.u32 %v342, 7
      %v344 = vsub.s32 0, %v343
      %v345 = vrot.slane %v340, %v344
      %v351 = vunpack.c.l.b16 %v242
      %v352 = vunpack.c.l.b16 %v243
      %v353 = vunpack.c.l.b16 %v244
      %v354 = vunpack.c.l.b16 %v245
      %v355 = vpack.c.b16 %v352, %v351
      %v356 = vpack.c.b16 %v354, %v353
      %vm359 = vcmask 261120
      %v361 = vsel %vm359, %v338, 0
      %v364 = vsel %vm359, %v339, 0
      %366 = vmatprep.subr.bf16.mxu0 0
      %367 = vmatpush1.bf16.msra.mxu0 %v355
      %368 = vmatprep.subr.bf16.mxu0 0
      %369 = vmatpush1.bf16.msra.mxu0 %v356
      %370 = vmatprep.subr.bf16.mxu0 0
      %371 = vmatpush1.bf16.msra.mxu0 0
      %372 = vmatprep.subr.bf16.mxu0 0
      %373 = vmatpush1.bf16.msra.mxu0 0
      %374 = vmatprep.subr.bf16.mxu0 0
      %375 = vmatpush1.bf16.msra.mxu0 0
      %376 = vmatprep.subr.bf16.mxu0 0
      %377 = vmatpush1.bf16.msra.mxu0 0
      %378 = vmatprep.subr.bf16.mxu0 0
      %379 = vmatpush1.bf16.msra.mxu0 0
      %380 = vmatprep.subr.bf16.mxu0 0
      %381 = vmatpush1.bf16.msra.mxu0 0
      %382 = vmatprep.subr.bf16.mxu0 0
      %383 = vmatpush1.bf16.msra.mxu0 0
      %384 = vmatprep.subr.bf16.mxu0 0
      %385 = vmatpush1.bf16.msra.mxu0 0
      %386 = vmatprep.subr.bf16.mxu0 0
      %387 = vmatpush1.bf16.msra.mxu0 0
      %388 = vmatprep.subr.bf16.mxu0 0
      %389 = vmatpush1.bf16.msra.mxu0 0
      %390 = vmatprep.subr.bf16.mxu0 0
      %391 = vmatpush1.bf16.msra.mxu0 0
      %392 = vmatprep.subr.bf16.mxu0 0
      %393 = vmatpush1.bf16.msra.mxu0 0
      %394 = vmatprep.subr.bf16.mxu0 0
      %395 = vmatpush1.bf16.msra.mxu0 0
      %396 = vmatprep.subr.bf16.mxu0 0
      %397 = vmatpush1.bf16.msra.mxu0 0
      %398 = vmatprep.mubr.bf16.mxu0 0
      %399 = vmatmul.mubr.bf16.gmra.mrb[0].mxu0 %v361
      %v400 = vpop.f32.mrb[0].mxu0
      %v401 = vadd.f32 %v345, %v400
      %v402 = vpop.f32.mrb[0].mxu0
      %v403 = vpop.f32.mrb[0].mxu0
      %v404 = vadd.f32 %v345, %v403
      %v405 = vpop.f32.mrb[0].mxu0
      %406 = vmatprep.mubr.bf16.mxu0 0
      %407 = vmatmul.mubr.bf16.gmra.mrb[0].mxu0 %v364
      %v408 = vpop.f32.mrb[0].mxu0
      %v409 = vadd.f32 %v345, %v408
      %v410 = vpop.f32.mrb[0].mxu0
      %v411 = vpop.f32.mrb[0].mxu0
      %v412 = vadd.f32 %v345, %v411
      %v413 = vpop.f32.mrb[0].mxu0
      %414 = vdwg.mxu0
      %v415 = vtanh.pop %v401
      %v416 = vtanh.pop %v404
      %v417 = vtanh.pop %v409
      %v418 = vtanh.pop %v412
      %vm419 = vcmask 130048
      %v420 = vsel %vm419, %v415, -inf
      %421 = vmax.xlane.f32.xlu0 %v420
      %v422 = vpop.xlane.xlu0 %421
      %v423 = vsel %vm419, %v416, -inf
      %424 = vmax.xlane.f32.xlu0 %v423
      %v425 = vpop.xlane.xlu0 %424
      %v426 = vsel %vm419, %v417, -inf
      %427 = vmax.xlane.f32.xlu0 %v426
      %v428 = vpop.xlane.xlu0 %427
      %v429 = vsel %vm419, %v418, -inf
      %430 = vmax.xlane.f32.xlu0 %v429
      %v431 = vpop.xlane.xlu0 %430
      %v432 = vsub.f32 %v415, %v422
      %v433 = vsub.f32 %v416, %v425
      %v434 = vsub.f32 %v417, %v428
      %v435 = vsub.f32 %v418, %v431
      %v436 = vmul.f32 %v432, 1.442695
      %v437 = vpow.pop %v436
      %v438 = vmul.f32 %v433, 1.442695
      %v439 = vpow.pop %v438
      %v440 = vmul.f32 %v434, 1.442695
      %v441 = vpow.pop %v440
      %v442 = vmul.f32 %v435, 1.442695
      %v443 = vpow.pop %v442
      %v444 = vsel %vm419, %v437, 0.0
      %445 = vadd.xlane.f32.xlu0 %v444
      %v446 = vpop.xlane.xlu0 %445
      %v447 = vsel %vm419, %v439, 0.0
      %448 = vadd.xlane.f32.xlu0 %v447
      %v449 = vpop.xlane.xlu0 %448
      %v450 = vsel %vm419, %v441, 0.0
      %451 = vadd.xlane.f32.xlu0 %v450
      %v452 = vpop.xlane.xlu0 %451
      %v453 = vsel %vm419, %v443, 0.0
      %454 = vadd.xlane.f32.xlu0 %v453
      %v455 = vpop.xlane.xlu0 %454
      %v456 = vrcp.pop %v446
      %v457 = vrcp.pop %v449
      %v458 = vrcp.pop %v452
      %v459 = vrcp.pop %v455
      %v460 = vmul.f32 %v437, %v456
      %v461 = vmul.f32 %v439, %v457
      %v462 = vmul.f32 %v441, %v458
      %v463 = vmul.f32 %v443, %v459
      %468 = vrot.lane.b32.xlu0 %v415, 16
      %v469 = vpop.permute.xlu0 %468
      %470 = vrot.lane.b32.xlu0 %v416, 16
      %v471 = vpop.permute.xlu0 %470
      %472 = vrot.lane.b32.xlu0 %v417, 16
      %v473 = vpop.permute.xlu0 %472
      %474 = vrot.lane.b32.xlu0 %v418, 16
      %v475 = vpop.permute.xlu0 %474
      %v480 = vsel %vm419, %v460, %v469
      %v481 = vsel %vm419, %v461, %v471
      %v482 = vsel %vm419, %v462, %v473
      %v483 = vsel %vm419, %v463, %v475
      %484 = vst.msk [vmem:[%s226] sm:$0xff] %vm359, %v480
      %485 = vst.msk [vmem:[%s226 + $0x8] sm:$0xff] %vm359, %v481
      %486 = vst.msk [vmem:[%s226 + $0x10] sm:$0xff] %vm359, %v482
      %487 = vst.msk [vmem:[%s226 + $0x18] sm:$0xff] %vm359, %v483
      %s488 = smul.u32 4, %s16
      %p489 = scmp.lt.s32.totalorder %s488, 7
      %s490 = scalar_select %p489, %s488, 7
      %s491 = smul.addr %s490, 8
      %s492 = scalar_lea.vmem %s5, %s491
      // Predicated region
      $region41: #{net_forward.1} parent=39 // pred_check
        %p493 = pneg %p144
      $region42: #{net_forward.1} parent=39 // pred_check_branch
        %495 = sbr.rel (%p493) target = $region44
      $region43: #{net_forward.1} parent=39 // pred_region
        %s496 = smul.u32 4, %s16
      $region44: #{net_forward.1} parent=39 // pred_fallthru
        _
    $region40: #{net_forward.1} parent=5 // pred_fallthru
      _
    %p497 = scmp.le.s32.totalorder 2, %s11
    // Predicated region
    $region45: #{net_forward.1} parent=5 // pred_check
      %p498 = pneg %p497
    $region46: #{net_forward.1} parent=5 // pred_check_branch
      %500 = sbr.rel (%p498) target = $region48
    $region47: #{net_forward.1} parent=5 // pred_region
      %s501 = ssub.s32 %s11, 2
      // Predicated region
      $region49: #{net_forward.1} parent=47 // pred_check
        %p502 = pneg %p150
      $region50: #{net_forward.1} parent=47 // pred_check_branch
        %504 = sbr.rel (%p502) target = $region52
      $region51: #{net_forward.1} parent=47 // pred_region
        %s505 = smul.u32 4, %s17
        %p506 = scmp.lt.s32.totalorder %s505, 7
        %s507 = scalar_select %p506, %s505, 7
        %s508 = smul.addr %s507, 8
        %s509 = scalar_lea.vmem %s5, %s508
      $region52: #{net_forward.1} parent=47 // pred_fallthru
        _
    $region48: #{net_forward.1} parent=5 // pred_fallthru
      _
  $region6: #{net_forward.1} parent=0 // loop_footer
    %s15 = sadd.s32 1, %s11
  $region7: #{net_forward.1} parent=0 // loop_footer_branch
    %10 = sbr.rel target = $region3
  $region8: #{net_forward.1} parent=0 // loop_exit
    _

</llo_original>
